<compile_context>
chip_gen: v7x
topology: tpu7x:2x2x1
jax: 0.10.0
libtpu: 0.0.40
codegen_flags: <defaults>
</compile_context>

<pallas_src>
import jax
import jax.numpy as jnp
from jax.experimental import pallas as pl
from jax.experimental.pallas import tpu as pltpu


def _round_up(x, m):
    return (x + m - 1) // m * m


# ----------------------------------------------------------------------------
# Kernel: one (TM, H_in_p) tile of the flattened input -> (TM, H_out_p) tile
# of the output.  Weight/bias blocks are the same for every grid step, so they
# stay resident in VMEM.  f32 accumulation on the MXU, f32 bias add (VPU-safe
# on v5e), cast to the output dtype only on the final store.
# ----------------------------------------------------------------------------
def _linear_kernel(x_ref, w_ref, b_ref, o_ref):
    # x_ref: (TM, H_in_p)  w_ref: (H_in_p, H_out_p)  b_ref: (1, H_out_p) f32
    acc = jnp.dot(x_ref[...], w_ref[...], preferred_element_type=jnp.float32)
    o_ref[...] = (acc + b_ref[...]).astype(o_ref.dtype)


def prepare_linear_params(weight, bias, compute_dtype=None):
    """Transpose / pad / (optionally) cast nn.Linear params ONCE.

    weight: (H_out, H_in) PyTorch layout, bias: (H_out,).
    Returns (w_padded (H_in_p, H_out_p), bias_padded (1, H_out_p) f32, H_out).
    Hoist this out of the per-step forward path; the weights are static.
    """
    h_out, h_in = weight.shape
    h_in_p = _round_up(h_in, 128)
    h_out_p = _round_up(h_out, 128)

    w_t = weight.T                                   # (H_in, H_out)
    if compute_dtype is not None:
        w_t = w_t.astype(compute_dtype)
    w_p = jnp.zeros((h_in_p, h_out_p), w_t.dtype).at[:h_in, :h_out].set(w_t)
    b_p = jnp.zeros((1, h_out_p), jnp.float32).at[0, :h_out].set(
        bias.astype(jnp.float32))
    return w_p, b_p, h_out


def _choose_tm(m, h_in_p, h_out_p, in_dsize, out_dsize,
               vmem_budget_bytes=24 * 1024 * 1024, tm_max=1024):
    """Pick the M-tile so double-buffered tiles + resident weight fit the
    scoped-VMEM default (32 MiB) on all of v5e / v6e / v7x."""
    # Weight + bias: count twice to be conservative (pipelining machinery).
    fixed = 2 * (h_in_p * h_out_p * in_dsize + h_out_p * 4)
    # Double-buffered x tile + out tile, per row.
    per_row = 2 * (h_in_p * in_dsize + h_out_p * out_dsize)
    tm = (vmem_budget_bytes - fixed) // max(per_row, 1)
    tm = max(256, (tm // 256) * 256)      # multiple of 256 -> MXU-friendly
    tm = min(tm, tm_max)
    # Never tile past the (8-aligned) problem size.
    tm = min(tm, _round_up(max(m, 1), 8))
    return tm


def sequence_wise_linear(x, weight, bias, *, compute_dtype=None):
    """SequenceWise(nn.Linear) forward.

    x:      (T, N, H_in)  time-major (or already-2D (M, H_in))
    weight: (H_out, H_in)   -- PyTorch nn.Linear layout
    bias:   (H_out,)
    compute_dtype: optional MXU operand dtype (e.g. jnp.bfloat16);
                   accumulation / bias add stay f32, output keeps x.dtype.
    returns (T, N, H_out)  (or (M, H_out) for 2D input)
    """
    orig_shape = x.shape
    if x.ndim > 2:
        leading = orig_shape[:2]
        x2 = x.reshape((-1,) + orig_shape[2:])
    else:
        leading = None
        x2 = x

    out_dtype = x2.dtype
    m, h_in = x2.shape

    w_p, b_p, h_out = prepare_linear_params(weight, bias, compute_dtype)
    h_in_p, h_out_p = w_p.shape

    xin = x2.astype(w_p.dtype) if compute_dtype is not None else x2
    in_dsize = jnp.dtype(xin.dtype).itemsize
    out_dsize = jnp.dtype(out_dtype).itemsize

    tm = _choose_tm(m, h_in_p, h_out_p, in_dsize, out_dsize)
    m_p = _round_up(m, tm)

    # Zero-pad M and H_in; padding contributes zero to the matmul and the
    # padded rows/lanes are sliced off below.
    x_p = jnp.zeros((m_p, h_in_p), xin.dtype).at[:m, :h_in].set(xin)

    cost = pl.CostEstimate(
        flops=2 * m * h_in * h_out,
        transcendentals=0,
        bytes_accessed=(m * h_in * in_dsize + m * h_out * out_dsize
                        + h_in * h_out * in_dsize + h_out * 4),
    )

    out_p = pl.pallas_call(
        _linear_kernel,
        out_shape=jax.ShapeDtypeStruct((m_p, h_out_p), out_dtype),
        grid_spec=pl.GridSpec(
            grid=(m_p // tm,),
            in_specs=[
                pl.BlockSpec((tm, h_in_p), lambda i: (i, 0)),
                pl.BlockSpec((h_in_p, h_out_p), lambda i: (0, 0)),  # resident
                pl.BlockSpec((1, h_out_p), lambda i: (0, 0)),       # resident
            ],
            out_specs=pl.BlockSpec((tm, h_out_p), lambda i: (i, 0)),
        ),
        compiler_params=pltpu.CompilerParams(
            dimension_semantics=("parallel",)),
        cost_estimate=cost,
    )(x_p, w_p, b_p)

    out2 = out_p[:m, :h_out]
    if leading is not None:
        return out2.reshape(leading + (h_out,))
    return out2


if __name__ == "__main__":
    # Small shapes implied by the T*N*H convention.
    T, N, H_IN, H_OUT = 8, 2, 32, 64

    key = jax.random.PRNGKey(0)
    kx, kw, kb = jax.random.split(key, 3)

    x = jax.random.normal(kx, (T, N, H_IN), dtype=jnp.float32)
    # Deterministic parameter init (PyTorch-Linear-like uniform bound).
    bound = 1.0 / (H_IN ** 0.5)
    weight = jax.random.uniform(kw, (H_OUT, H_IN), jnp.float32, -bound, bound)
    bias = jax.random.uniform(kb, (H_OUT,), jnp.float32, -bound, bound)

    ref = (x.reshape(-1, H_IN) @ weight.T + bias).reshape(T, N, H_OUT)

    # f32 path (exact semantics of the original module).
    out = jax.block_until_ready(sequence_wise_linear(x, weight, bias))
    assert out.shape == (T, N, H_OUT)
    assert jnp.allclose(out, ref, atol=1e-5, rtol=1e-5)

    # bf16-fed MXU path (f32 accumulation) -- the v5e/v6e perf configuration.
    out_bf16 = jax.block_until_ready(
        sequence_wise_linear(x, weight, bias, compute_dtype=jnp.bfloat16))
    assert out_bf16.shape == (T, N, H_OUT)
    assert jnp.allclose(out_bf16, ref, atol=5e-2, rtol=5e-2)

    # TODO(synk): PackedSequence branch has no Pallas/JAX equivalent; only the
    # dense-tensor path is implemented (batch_sizes passthrough omitted).
    print("KERNEL_OK")
</pallas_src>

<mosaic_0001>
module attributes {stable_mosaic.version = 11 : i64} {
  func.func @_linear_kernel(%arg0: i32, %arg1: memref<16x128xf32, #tpu.memory_space<vmem>>, %arg2: memref<128x128xf32, #tpu.memory_space<vmem>>, %arg3: memref<1x128xf32, #tpu.memory_space<vmem>>, %arg4: memref<16x128xf32, #tpu.memory_space<vmem>>) attributes {dimension_semantics = [#tpu.dimension_semantics<parallel>], iteration_bounds = array<i64: 1>, scalar_prefetch = 0 : i64, scratch_operands = 0 : i64, tpu.core_type = #tpu.core_type<tc>, window_params = [{transform_indices = @transform_0, window_bounds = array<i64: 16, 128>}, {pipeline_mode = #tpu.pipeline_mode<synchronous>, transform_indices = @transform_1, window_bounds = array<i64: 128, 128>}, {pipeline_mode = #tpu.pipeline_mode<synchronous>, transform_indices = @transform_2, window_bounds = array<i64: 1, 128>}, {transform_indices = @transform_3, window_bounds = array<i64: 16, 128>}]} {
    %c0 = arith.constant 0 : index
    %c0_0 = arith.constant 0 : index
    %0 = vector.load %arg1[%c0, %c0_0] : memref<16x128xf32, #tpu.memory_space<vmem>>, vector<16x128xf32>
    %c0_1 = arith.constant 0 : index
    %c0_2 = arith.constant 0 : index
    %1 = vector.load %arg2[%c0_1, %c0_2] : memref<128x128xf32, #tpu.memory_space<vmem>>, vector<128x128xf32>
    %cst = arith.constant dense<0.000000e+00> : vector<16x128xf32>
    %2 = tpu.matmul %0, %1, %cst {dimension_numbers = #tpu.dot_dimension_numbers<[1], [0], [0], [1], [0, 0, 1, 1], [], []>} : vector<16x128xf32>, vector<128x128xf32>, vector<16x128xf32> -> vector<16x128xf32>
    %c0_3 = arith.constant 0 : index
    %c0_4 = arith.constant 0 : index
    %3 = vector.load %arg3[%c0_3, %c0_4] : memref<1x128xf32, #tpu.memory_space<vmem>>, vector<1x128xf32>
    %4 = vector.broadcast %3 : vector<1x128xf32> to vector<16x128xf32>
    %5 = arith.addf %2, %4 : vector<16x128xf32>
    %c0_5 = arith.constant 0 : index
    %c0_6 = arith.constant 0 : index
    %6 = vector.load %arg4[%c0_5, %c0_6] : memref<16x128xf32, #tpu.memory_space<vmem>>, vector<16x128xf32>
    tpu.vector_store %arg4[%c0_5, %c0_6], %5 {strides = array<i32>} : memref<16x128xf32, #tpu.memory_space<vmem>>, vector<16x128xf32>,
    return
  }
  func.func @transform_0(%arg0: i32) -> (i32, i32) {
    %c0_i32 = arith.constant 0 : i32
    %c0_i32_0 = arith.constant 0 : i32
    return %arg0, %c0_i32 : i32, i32
  }
  func.func @transform_1(%arg0: i32) -> (i32, i32) {
    %c0_i32 = arith.constant 0 : i32
    %c0_i32_0 = arith.constant 0 : i32
    %c0_i32_1 = arith.constant 0 : i32
    return %c0_i32, %c0_i32_0 : i32, i32
  }
  func.func @transform_2(%arg0: i32) -> (i32, i32) {
    %c0_i32 = arith.constant 0 : i32
    %c0_i32_0 = arith.constant 0 : i32
    %c0_i32_1 = arith.constant 0 : i32
    return %c0_i32, %c0_i32_0 : i32, i32
  }
  func.func @transform_3(%arg0: i32) -> (i32, i32) {
    %c0_i32 = arith.constant 0 : i32
    %c0_i32_0 = arith.constant 0 : i32
    return %arg0, %c0_i32 : i32, i32
  }
}

</mosaic_0001>

<llo_original>
// kernel: tpu_custom_call.1
$region0: #{tpu_custom_call.1}
  #allocation0 [shape = 'u32[]', space=smem, size = 0x4, offset = 0x4, fixed_abs, tag = 'smem constant byte address 0x4 - core index']
  #allocation1 [shape = 'u32[144,128]{1,0:T(1,128)}', space=vmem, size = 0x12000, scoped, tag = 'internal scratch']
  %s0 = inlined_call_operand.hbm [shape: f32[16,128], index: 0, kind: input, shape index: {}]
  %s1 = inlined_call_operand.hbm [shape: f32[128,128], index: 1, kind: input, shape index: {}]
  %s2 = inlined_call_operand.vmem [shape: f32[1,128], index: 2, kind: input, shape index: {}]
  %s3 = inlined_call_operand.hbm [shape: f32[16,128], index: 3, kind: output, shape index: {}]
  %s4 = sld [smem:[#allocation0]]
  $region30: #{tpu_custom_call.1} parent=0
    _
  %s6 = ssub.s32 1, %s4
  %s7 = scalar_select 0, %s6, %s4
  $region1: #{tpu_custom_call.1} parent=0
    #allocation2 [shape = 'u8[8192]{0}', space=vmem, size = 0x2000, scoped, tag = 'input window, operand 0, single buffered']
    #allocation3 [shape = 's32[1]{0}', space=sflag, size = 0x4, scoped, tag = 'scoped memory for tpu_custom_call.1']
    #allocation4 [shape = 's32[1]{0}', space=sflag, size = 0x4, scoped, tag = 'scoped memory for tpu_custom_call.1']
    #allocation5 [shape = 'u8[65536]{0}', space=vmem, size = 0x10000, scoped, tag = 'input window, operand 1, single buffered']
    #allocation6 [shape = 's32[1]{0}', space=sflag, size = 0x4, scoped, tag = 'scoped memory for tpu_custom_call.1']
    #allocation7 [shape = 'u8[8192]{0}', space=vmem, size = 0x2000, scoped, tag = 'output window, operand 0, single buffered']
    %8 = vsyncpa [#allocation3], 0
    %9 = vsyncpa [#allocation6], 0
    %10 = vsyncpa [#allocation4], 0
    // Predicated region
    $region2: #{tpu_custom_call.1} parent=1 // pred_check
      _
    $region3: #{tpu_custom_call.1} parent=1 // pred_check_branch
      %12 = sbr.rel (0) target = $region5
    $region4: #{tpu_custom_call.1} parent=1 // pred_region
      %s14 = ssub.s32 256, 256
      %15 = vsyncadd [#allocation3], %s14
      %s16 = sshll.u32 [#allocation2], 4
      %s17 = int_to_ptr.vmem [resolvable:$true] %s16
      %22 = dma.hbm_to_vmem [thread:$0]  %s0, 256, %s17, [#allocation3], 128, 128, 8
    $region5: #{tpu_custom_call.1} parent=1 // pred_fallthru
      _
    // Predicated region
    $region6: #{tpu_custom_call.1} parent=1 // pred_check
      _
    $region7: #{tpu_custom_call.1} parent=1 // pred_check_branch
      %24 = sbr.rel (0) target = $region9
    $region8: #{tpu_custom_call.1} parent=1 // pred_region
      %s26 = ssub.s32 2048, 2048
      %27 = vsyncadd [#allocation6], %s26
      %s28 = sshll.u32 [#allocation5], 4
      %s29 = int_to_ptr.vmem [resolvable:$true] %s28
      %34 = dma.hbm_to_vmem [thread:$0]  %s1, 2048, %s29, [#allocation6], 128, 128, 8
    $region9: #{tpu_custom_call.1} parent=1 // pred_fallthru
      _
    // Predicated region
    $region10: #{tpu_custom_call.1} parent=1 // pred_check
      _
    $region11: #{tpu_custom_call.1} parent=1 // pred_check_branch
      %36 = sbr.rel (0) target = $region13
    $region12: #{tpu_custom_call.1} parent=1 // pred_region
      _
    $region13: #{tpu_custom_call.1} parent=1 // pred_fallthru
      _
    // Predicated region
    $region14: #{tpu_custom_call.1} parent=1 // pred_check
      _
    $region15: #{tpu_custom_call.1} parent=1 // pred_check_branch
      %38 = sbr.rel (0) target = $region17
    $region16: #{tpu_custom_call.1} parent=1 // pred_region
      %39 = dma.done [#allocation3], 256
    $region17: #{tpu_custom_call.1} parent=1 // pred_fallthru
      _
    // Predicated region
    $region18: #{tpu_custom_call.1} parent=1 // pred_check
      _
    $region19: #{tpu_custom_call.1} parent=1 // pred_check_branch
      %41 = sbr.rel (0) target = $region21
    $region20: #{tpu_custom_call.1} parent=1 // pred_region
      %42 = dma.done [#allocation6], 2048
    $region21: #{tpu_custom_call.1} parent=1 // pred_fallthru
      _
    %v43 = vld [vmem:[#allocation2] sm:$0xff]
    %v44 = vld [vmem:[#allocation2 + $0x8] sm:$0xff]
    %v45 = vld [vmem:[#allocation5] sm:$0xff]
    %v46 = vld [vmem:[#allocation5 + $0x8] sm:$0xff]
    %v47 = vld [vmem:[#allocation5 + $0x10] sm:$0xff]
    %v48 = vld [vmem:[#allocation5 + $0x18] sm:$0xff]
    %v49 = vld [vmem:[#allocation5 + $0x20] sm:$0xff]
    %v50 = vld [vmem:[#allocation5 + $0x28] sm:$0xff]
    %v51 = vld [vmem:[#allocation5 + $0x30] sm:$0xff]
    %v52 = vld [vmem:[#allocation5 + $0x38] sm:$0xff]
    %v53 = vld [vmem:[#allocation5 + $0x40] sm:$0xff]
    %v54 = vld [vmem:[#allocation5 + $0x48] sm:$0xff]
    %v55 = vld [vmem:[#allocation5 + $0x50] sm:$0xff]
    %v56 = vld [vmem:[#allocation5 + $0x58] sm:$0xff]
    %v57 = vld [vmem:[#allocation5 + $0x60] sm:$0xff]
    %v58 = vld [vmem:[#allocation5 + $0x68] sm:$0xff]
    %v59 = vld [vmem:[#allocation5 + $0x70] sm:$0xff]
    %v60 = vld [vmem:[#allocation5 + $0x78] sm:$0xff]
    %v61 = vld [vmem:[%s2] sm:$0x1]
    %v63 = vlaneseq
    %v64 = vshrl.u32 %v63, 7
    %v65 = vsub.s32 0, %v64
    %v66 = vrot.slane %v61, %v65
    %68 = vmatprep.subr.mxu0 0.0
    %69 = vmatpush1.msra.mxu0 %v45
    %70 = vmatprep.subr.mxu0 0.0
    %71 = vmatpush1.msra.mxu0 %v46
    %72 = vmatprep.subr.mxu0 0.0
    %73 = vmatpush1.msra.mxu0 %v47
    %74 = vmatprep.subr.mxu0 0.0
    %75 = vmatpush1.msra.mxu0 %v48
    %76 = vmatprep.subr.mxu0 0.0
    %77 = vmatpush1.msra.mxu0 %v49
    %78 = vmatprep.subr.mxu0 0.0
    %79 = vmatpush1.msra.mxu0 %v50
    %80 = vmatprep.subr.mxu0 0.0
    %81 = vmatpush1.msra.mxu0 %v51
    %82 = vmatprep.subr.mxu0 0.0
    %83 = vmatpush1.msra.mxu0 %v52
    %84 = vmatprep.subr.mxu0 0.0
    %85 = vmatpush1.msra.mxu0 %v53
    %86 = vmatprep.subr.mxu0 0.0
    %87 = vmatpush1.msra.mxu0 %v54
    %88 = vmatprep.subr.mxu0 0.0
    %89 = vmatpush1.msra.mxu0 %v55
    %90 = vmatprep.subr.mxu0 0.0
    %91 = vmatpush1.msra.mxu0 %v56
    %92 = vmatprep.subr.mxu0 0.0
    %93 = vmatpush1.msra.mxu0 %v57
    %94 = vmatprep.subr.mxu0 0.0
    %95 = vmatpush1.msra.mxu0 %v58
    %96 = vmatprep.subr.mxu0 0.0
    %97 = vmatpush1.msra.mxu0 %v59
    %98 = vmatprep.subr.mxu0 0.0
    %99 = vmatpush1.msra.mxu0 %v60
    %100 = vmatprep.subr.mxu0 0.0
    %101 = vmatpush1.msra.mxu0 0.0
    %102 = vmatprep.subr.mxu0 0.0
    %103 = vmatpush1.msra.mxu0 0.0
    %104 = vmatprep.subr.mxu0 0.0
    %105 = vmatpush1.msra.mxu0 0.0
    %106 = vmatprep.subr.mxu0 0.0
    %107 = vmatpush1.msra.mxu0 0.0
    %108 = vmatprep.subr.mxu0 0.0
    %109 = vmatpush1.msra.mxu0 0.0
    %110 = vmatprep.subr.mxu0 0.0
    %111 = vmatpush1.msra.mxu0 0.0
    %112 = vmatprep.subr.mxu0 0.0
    %113 = vmatpush1.msra.mxu0 0.0
    %114 = vmatprep.subr.mxu0 0.0
    %115 = vmatpush1.msra.mxu0 0.0
    %116 = vmatprep.subr.mxu0 0.0
    %117 = vmatpush1.msra.mxu0 0.0
    %118 = vmatprep.subr.mxu0 0.0
    %119 = vmatpush1.msra.mxu0 0.0
    %120 = vmatprep.subr.mxu0 0.0
    %121 = vmatpush1.msra.mxu0 0.0
    %122 = vmatprep.subr.mxu0 0.0
    %123 = vmatpush1.msra.mxu0 0.0
    %124 = vmatprep.subr.mxu0 0.0
    %125 = vmatpush1.msra.mxu0 0.0
    %126 = vmatprep.subr.mxu0 0.0
    %127 = vmatpush1.msra.mxu0 0.0
    %128 = vmatprep.subr.mxu0 0.0
    %129 = vmatpush1.msra.mxu0 0.0
    %130 = vmatprep.subr.mxu0 0.0
    %131 = vmatpush1.msra.mxu0 0.0
    %132 = vmatprep.mubr.f32.mxu0 0.0
    %133 = vmatmul.mubr.f32.gmra.mrb[0].mxu0 %v43
    %v134 = vpop.f32.mrb[0].mxu0
    %v135 = vadd.f32 %v66, %v134
    %v136 = vpop.f32.mrb[0].mxu0
    %137 = vmatprep.mubr.f32.mxu0 0.0
    %138 = vmatmul.mubr.f32.gmra.mrb[0].mxu0 %v44
    %v139 = vpop.f32.mrb[0].mxu0
    %v140 = vadd.f32 %v66, %v139
    %v141 = vpop.f32.mrb[0].mxu0
    %142 = vdwg.mxu0
    %143 = vst [vmem:[#allocation7] sm:$0xff] %v135
    %144 = vst [vmem:[#allocation7 + $0x8] sm:$0xff] %v140
    // Predicated region
    $region22: #{tpu_custom_call.1} parent=1 // pred_check
      _
    $region23: #{tpu_custom_call.1} parent=1 // pred_check_branch
      %146 = sbr.rel (0) target = $region25
    $region24: #{tpu_custom_call.1} parent=1 // pred_region
      %s148 = ssub.s32 256, 256
      %149 = vsyncadd [#allocation4], %s148
      %s150 = sshll.u32 [#allocation7], 4
      %s151 = int_to_ptr.vmem [resolvable:$true] %s150
      %156 = dma.vmem_to_hbm [thread:$0]  %s151, 256, %s3, [#allocation4], 128, 128, 8
    $region25: #{tpu_custom_call.1} parent=1 // pred_fallthru
      _
    // Predicated region
    $region26: #{tpu_custom_call.1} parent=1 // pred_check
      _
    $region27: #{tpu_custom_call.1} parent=1 // pred_check_branch
      %158 = sbr.rel (0) target = $region29
    $region28: #{tpu_custom_call.1} parent=1 // pred_region
      %159 = dma.done [#allocation4], 256
    $region29: #{tpu_custom_call.1} parent=1 // pred_fallthru
      _
    %160 = vsyncpa [#allocation3], 1
    %161 = vsyncpa [#allocation6], 1
    %162 = vsyncpa [#allocation4], 1

</llo_original>
